<compile_context>
chip_gen: v6e
topology: v6e:2x2x1
jax: 0.10.0
libtpu: 0.0.40
codegen_flags: <defaults>
</compile_context>

<pallas_src>
import jax
import jax.numpy as jnp
import numpy as np
from jax import lax
from jax.experimental import pallas as pl
from jax.experimental.pallas import tpu as pltpu

LN_EPS = 1e-5  # PyTorch nn.LayerNorm default


def bert_embedding_kernel(tok_sm,            # scalar-prefetch: [B, S] int32 in SMEM
                          seg_ref,           # [1, T, 1] int32 (VMEM tile)
                          tok_tbl_hbm,       # [V, H] table, HBM-resident (pl.ANY)
                          pos_ref,           # [T, H] position-table tile (VMEM)
                          seg_tbl_ref,       # [2, H] (VMEM)
                          gamma_ref,         # [1, H] (VMEM)
                          beta_ref,          # [1, H] (VMEM)
                          out_ref,           # [1, T, H]
                          gather_buf,        # scratch VMEM [T, H]
                          dma_sem):          # scratch DMA semaphore (1,)
    b = pl.program_id(0)
    s = pl.program_id(1)
    T, H = gather_buf.shape
    V = tok_tbl_hbm.shape[0]
    s0 = s * T

    # 1) Issue one row-DMA per token in this tile (token table stays in HBM).
    #    Ids are clamped so malformed ids can never cause an OOB DMA.
    @pl.loop(0, T)
    def _issue(j):
        tid = jnp.clip(tok_sm[b, s0 + j], 0, V - 1)
        pltpu.make_async_copy(tok_tbl_hbm.at[pl.ds(tid, 1), :],
                              gather_buf.at[pl.ds(j, 1), :],
                              dma_sem.at[0]).start()

    # 2) While the gather is in flight: position + segment embeddings (VPU).
    pos = pos_ref[...].astype(jnp.float32)                # [T, H]
    seg = seg_ref[0]                                      # [T, 1] int32
    seg0 = seg_tbl_ref[0:1, :].astype(jnp.float32)        # [1, H]
    seg1 = seg_tbl_ref[1:2, :].astype(jnp.float32)        # [1, H]
    pos_seg = pos + jnp.where(seg == 0, seg0, seg1)       # [T, H]

    # 3) Wait for the gathered token rows (all copies are identical row-size,
    #    so a stand-in descriptor per row consumes one completion each).
    @pl.loop(0, T)
    def _wait(j):
        pltpu.make_async_copy(tok_tbl_hbm.at[pl.ds(0, 1), :],
                              gather_buf.at[pl.ds(0, 1), :],
                              dma_sem.at[0]).wait()

    x = gather_buf[...].astype(jnp.float32) + pos_seg     # [T, H]

    # 4) LayerNorm over hidden dim (f32), affine via resident gamma/beta.
    mean = jnp.mean(x, axis=-1, keepdims=True)
    xc = x - mean
    var = jnp.mean(xc * xc, axis=-1, keepdims=True)
    y = xc * lax.rsqrt(var + LN_EPS)
    y = y * gamma_ref[...] + beta_ref[...]

    # TODO(synk): training-mode dropout (p=0.1) omitted; eval-mode dropout is
    # the identity. Would use pltpu.prng_seed / prng_random_bits per tile.
    out_ref[0] = y.astype(out_ref.dtype)


def _choose_seq_tile(S: int, max_tile: int = 256) -> int:
    if S <= max_tile:
        return S
    for t in (256, 128, 64, 32, 16, 8):
        if S % t == 0:
            return t
    return S


def bert_embedding(token_ids, seg_ids, params, *, seq_tile=None):
    B, S = token_ids.shape
    tok_tbl = params["token_table"]
    pos_tbl = params["pos_table"]
    seg_tbl = params["seg_table"]
    gamma = params["gamma"].reshape(1, -1)
    beta = params["beta"].reshape(1, -1)
    V, H = tok_tbl.shape
    max_len = pos_tbl.shape[0]
    assert S <= max_len, "sequence longer than position table"

    T = seq_tile or _choose_seq_tile(S)
    assert S % T == 0, "sequence length must be divisible by the seq tile"
    assert T % 8 == 0, "sequence tile must be a multiple of 8"

    token_ids = token_ids.astype(jnp.int32)
    seg_ids3 = seg_ids.astype(jnp.int32).reshape(B, S, 1)

    grid = (B, S // T)

    return pl.pallas_call(
        bert_embedding_kernel,
        out_shape=jax.ShapeDtypeStruct((B, S, H), jnp.float32),
        grid_spec=pltpu.PrefetchScalarGridSpec(
            num_scalar_prefetch=1,                       # token ids -> SMEM
            grid=grid,
            in_specs=[
                pl.BlockSpec((1, T, 1), lambda b, s, tok: (b, s, 0)),   # seg ids
                pl.BlockSpec(memory_space=pl.ANY),                      # token table (HBM)
                pl.BlockSpec((T, H), lambda b, s, tok: (s, 0)),         # pos table tile
                pl.BlockSpec((2, H), lambda b, s, tok: (0, 0)),         # seg table
                pl.BlockSpec((1, H), lambda b, s, tok: (0, 0)),         # gamma
                pl.BlockSpec((1, H), lambda b, s, tok: (0, 0)),         # beta
            ],
            out_specs=pl.BlockSpec((1, T, H), lambda b, s, tok: (b, s, 0)),
            scratch_shapes=[
                pltpu.VMEM((T, H), tok_tbl.dtype),        # gathered token rows
                pltpu.SemaphoreType.DMA((1,)),            # gather completion sem
            ],
        ),
        compiler_params=pltpu.CompilerParams(
            dimension_semantics=("parallel", "parallel"),
            vmem_limit_bytes=32 * 1024 * 1024,
        ),
    )(token_ids, seg_ids3, tok_tbl, pos_tbl, seg_tbl, gamma, beta)


def bert_embedding_ref(token_ids, seg_ids, params):
    """Pure-JAX reference for correctness checking."""
    S = token_ids.shape[1]
    x = params["token_table"][token_ids]
    x = x + params["pos_table"][:S][None, :, :]
    x = x + params["seg_table"][seg_ids]
    mean = x.mean(-1, keepdims=True)
    var = ((x - mean) ** 2).mean(-1, keepdims=True)
    y = (x - mean) * lax.rsqrt(var + LN_EPS)
    return y * params["gamma"].reshape(1, 1, -1) + params["beta"].reshape(1, 1, -1)


if __name__ == "__main__":
    # Small, self-consistent shapes. H=128 keeps output stores lane-dense.
    B, S, H = 2, 8, 128
    vocab, max_len, pad_id = 64, 16, 0

    key = jax.random.PRNGKey(0)
    k1, k2, k3, k4, k5 = jax.random.split(key, 5)

    # nn.Embedding default init ~ N(0, 1); padding_idx row is zeroed.
    token_table = jax.random.normal(k1, (vocab, H), jnp.float32)
    token_table = token_table.at[pad_id].set(0.0)
    pos_table = jax.random.normal(k2, (max_len, H), jnp.float32)
    seg_table = jax.random.normal(k3, (2, H), jnp.float32)
    # nn.LayerNorm default init: weight=1, bias=0.
    gamma = jnp.ones((1, H), jnp.float32)
    beta = jnp.zeros((1, H), jnp.float32)

    params = dict(token_table=token_table, pos_table=pos_table,
                  seg_table=seg_table, gamma=gamma, beta=beta)

    token_ids = jax.random.randint(k4, (B, S), 0, vocab, dtype=jnp.int32)
    seg_ids = jax.random.randint(k5, (B, S), 0, 2, dtype=jnp.int32)

    out = bert_embedding(token_ids, seg_ids, params)
    jax.block_until_ready(out)
    assert out.shape == (B, S, H) and out.dtype == jnp.float32

    ref = bert_embedding_ref(token_ids, seg_ids, params)
    np.testing.assert_allclose(np.asarray(out), np.asarray(ref),
                               rtol=1e-4, atol=1e-4)
    print("KERNEL_OK")
</pallas_src>

<mosaic_0001>
module attributes {stable_mosaic.version = 11 : i64} {
  func.func @bert_embedding_kernel(%arg0: i32, %arg1: i32, %arg2: memref<2x8xi32, #tpu.memory_space<smem>>, %arg3: memref<1x8x1xi32, #tpu.memory_space<vmem>>, %arg4: memref<64x128xf32, #tpu.memory_space<any>>, %arg5: memref<8x128xf32, #tpu.memory_space<vmem>>, %arg6: memref<2x128xf32, #tpu.memory_space<vmem>>, %arg7: memref<1x128xf32, #tpu.memory_space<vmem>>, %arg8: memref<1x128xf32, #tpu.memory_space<vmem>>, %arg9: memref<1x8x128xf32, #tpu.memory_space<vmem>>, %arg10: memref<8x128xf32, #tpu.memory_space<vmem>>, %arg11: memref<1x!tpu.dma_semaphore, #tpu.memory_space<semaphore_mem>>) attributes {dimension_semantics = [#tpu.dimension_semantics<parallel>, #tpu.dimension_semantics<parallel>], iteration_bounds = array<i64: 2, 1>, scalar_prefetch = 1 : i64, scratch_operands = 2 : i64, tpu.core_type = #tpu.core_type<tc>, window_params = [{transform_indices = @transform_0, window_bounds = array<i64: 1, 8, 1>}, {}, {transform_indices = @transform_2, window_bounds = array<i64: 8, 128>}, {pipeline_mode = #tpu.pipeline_mode<synchronous>, transform_indices = @transform_3, window_bounds = array<i64: 2, 128>}, {pipeline_mode = #tpu.pipeline_mode<synchronous>, transform_indices = @transform_4, window_bounds = array<i64: 1, 128>}, {pipeline_mode = #tpu.pipeline_mode<synchronous>, transform_indices = @transform_5, window_bounds = array<i64: 1, 128>}, {transform_indices = @transform_6, window_bounds = array<i64: 1, 8, 128>}]} {
    %c8_i32 = arith.constant 8 : i32
    %0 = arith.muli %arg1, %c8_i32 : i32
    %c0_i32 = arith.constant 0 : i32
    %c8_i32_0 = arith.constant 8 : i32
    %1 = arith.addi %c0_i32, %c8_i32_0 : i32
    %c1_i32 = arith.constant 1 : i32
    scf.for %arg12 = %c0_i32 to %1 step %c1_i32  : i32 {
      %c1_i32_26 = arith.constant 1 : i32
      %45 = arith.muli %arg12, %c1_i32_26 : i32
      %c0_i32_27 = arith.constant 0 : i32
      %46 = arith.addi %c0_i32_27, %45 : i32
      %47 = arith.addi %0, %46 : i32
      %48 = arith.index_cast %arg0 : i32 to index
      %49 = arith.index_cast %47 : i32 to index
      %50 = memref.load %arg2[%48, %49] : memref<2x8xi32, #tpu.memory_space<smem>>
      %c0_i32_28 = arith.constant 0 : i32
      %c63_i32 = arith.constant 63 : i32
      %51 = arith.maxsi %c0_i32_28, %50 : i32
      %52 = arith.minsi %c63_i32, %51 : i32
      %c0_i32_29 = arith.constant 0 : i32
      %c0_i32_30 = arith.constant 0 : i32
      %53 = tpu.memref_slice %arg4[%52, %c0_i32_30] : memref<64x128xf32, #tpu.memory_space<any>> -> memref<1x128xf32, #tpu.memory_space<any>>
      %c0_i32_31 = arith.constant 0 : i32
      %54 = tpu.memref_slice %arg10[%46, %c0_i32_31] : memref<8x128xf32, #tpu.memory_space<vmem>> -> memref<1x128xf32, #tpu.memory_space<vmem>>
      %55 = tpu.memref_slice %arg11[%c0_i32_29] : memref<1x!tpu.dma_semaphore, #tpu.memory_space<semaphore_mem>> -> memref<1x!tpu.dma_semaphore, #tpu.memory_space<semaphore_mem>>
      %56 = tpu.memref_squeeze %55 : memref<1x!tpu.dma_semaphore, #tpu.memory_space<semaphore_mem>> -> memref<!tpu.dma_semaphore, #tpu.memory_space<semaphore_mem>>
      tpu.enqueue_dma source(%53 : memref<1x128xf32, #tpu.memory_space<any>>) target(%54 : memref<1x128xf32, #tpu.memory_space<vmem>>) target_semaphore(%56 : memref<!tpu.dma_semaphore, #tpu.memory_space<semaphore_mem>>)
    }
    %c8_i32_1 = arith.constant 8 : i32
    %c0 = arith.constant 0 : index
    %c0_2 = arith.constant 0 : index
    %2 = vector.load %arg5[%c0, %c0_2] : memref<8x128xf32, #tpu.memory_space<vmem>>, vector<8x128xf32>
    %c0_3 = arith.constant 0 : index
    %c0_4 = arith.constant 0 : index
    %c0_5 = arith.constant 0 : index
    %3 = vector.load %arg3[%c0_3, %c0_4, %c0_5] : memref<1x8x1xi32, #tpu.memory_space<vmem>>, vector<1x8x1xi32>
    %4 = vector.shape_cast %3 : vector<1x8x1xi32> to vector<8x1xi32>
    %c0_6 = arith.constant 0 : index
    %c0_7 = arith.constant 0 : index
    %5 = vector.load %arg6[%c0_6, %c0_7] : memref<2x128xf32, #tpu.memory_space<vmem>>, vector<1x128xf32>
    %c1 = arith.constant 1 : index
    %c0_8 = arith.constant 0 : index
    %6 = vector.load %arg6[%c1, %c0_8] : memref<2x128xf32, #tpu.memory_space<vmem>>, vector<1x128xf32>
    %c0_i32_9 = arith.constant 0 : i32
    %7 = vector.broadcast %c0_i32_9 : i32 to vector<8x1xi32>
    %8 = arith.cmpi eq, %4, %7 : vector<8x1xi32>
    %9 = vector.shape_cast %8 : vector<8x1xi1> to vector<8x1xi1>
    %10 = vector.broadcast %9 : vector<8x1xi1> to vector<8x128xi1>
    %11 = vector.shape_cast %5 : vector<1x128xf32> to vector<1x128xf32>
    %12 = vector.broadcast %11 : vector<1x128xf32> to vector<8x128xf32>
    %13 = vector.shape_cast %6 : vector<1x128xf32> to vector<1x128xf32>
    %14 = vector.broadcast %13 : vector<1x128xf32> to vector<8x128xf32>
    %15 = arith.select %10, %12, %14 : vector<8x128xi1>, vector<8x128xf32>
    %16 = arith.addf %2, %15 : vector<8x128xf32>
    %c0_i32_10 = arith.constant 0 : i32
    %c8_i32_11 = arith.constant 8 : i32
    %17 = arith.addi %c0_i32_10, %c8_i32_11 : i32
    %c1_i32_12 = arith.constant 1 : i32
    scf.for %arg12 = %c0_i32_10 to %17 step %c1_i32_12  : i32 {
      %c0_i32_26 = arith.constant 0 : i32
      %c0_i32_27 = arith.constant 0 : i32
      %c0_i32_28 = arith.constant 0 : i32
      %45 = tpu.memref_slice %arg4[%c0_i32_27, %c0_i32_28] : memref<64x128xf32, #tpu.memory_space<any>> -> memref<1x128xf32, #tpu.memory_space<any>>
      %c0_i32_29 = arith.constant 0 : i32
      %c0_i32_30 = arith.constant 0 : i32
      %46 = tpu.memref_slice %arg10[%c0_i32_29, %c0_i32_30] : memref<8x128xf32, #tpu.memory_space<vmem>> -> memref<1x128xf32, #tpu.memory_space<vmem>>
      %47 = tpu.memref_slice %arg11[%c0_i32_26] : memref<1x!tpu.dma_semaphore, #tpu.memory_space<semaphore_mem>> -> memref<1x!tpu.dma_semaphore, #tpu.memory_space<semaphore_mem>>
      %48 = tpu.memref_squeeze %47 : memref<1x!tpu.dma_semaphore, #tpu.memory_space<semaphore_mem>> -> memref<!tpu.dma_semaphore, #tpu.memory_space<semaphore_mem>>
      tpu.wait_dma2 semaphore(%48 : memref<!tpu.dma_semaphore, #tpu.memory_space<semaphore_mem>>) src(%45 : memref<1x128xf32, #tpu.memory_space<any>>) dst(%46 : memref<1x128xf32, #tpu.memory_space<vmem>>)
    }
    %c0_13 = arith.constant 0 : index
    %c0_14 = arith.constant 0 : index
    %18 = vector.load %arg10[%c0_13, %c0_14] : memref<8x128xf32, #tpu.memory_space<vmem>>, vector<8x128xf32>
    %19 = arith.addf %18, %16 : vector<8x128xf32>
    %cst = arith.constant dense<0.000000e+00> : vector<8xf32>
    %20 = vector.multi_reduction <add>, %19, %cst [1] : vector<8x128xf32> to vector<8xf32>
    %21 = vector.shape_cast %20 : vector<8xf32> to vector<8x1xf32>
    %cst_15 = arith.constant 1.280000e+02 : f32
    %22 = vector.broadcast %cst_15 : f32 to vector<8x1xf32>
    %23 = arith.divf %21, %22 : vector<8x1xf32>
    %24 = vector.broadcast %23 : vector<8x1xf32> to vector<8x128xf32>
    %25 = arith.subf %19, %24 : vector<8x128xf32>
    %26 = arith.mulf %25, %25 : vector<8x128xf32>
    %cst_16 = arith.constant dense<0.000000e+00> : vector<8xf32>
    %27 = vector.multi_reduction <add>, %26, %cst_16 [1] : vector<8x128xf32> to vector<8xf32>
    %28 = vector.shape_cast %27 : vector<8xf32> to vector<8x1xf32>
    %cst_17 = arith.constant 1.280000e+02 : f32
    %29 = vector.broadcast %cst_17 : f32 to vector<8x1xf32>
    %30 = arith.divf %28, %29 : vector<8x1xf32>
    %cst_18 = arith.constant 9.99999974E-6 : f32
    %31 = vector.broadcast %cst_18 : f32 to vector<8x1xf32>
    %32 = arith.addf %30, %31 : vector<8x1xf32>
    %33 = math.rsqrt %32 : vector<8x1xf32>
    %34 = vector.broadcast %33 : vector<8x1xf32> to vector<8x128xf32>
    %35 = arith.mulf %25, %34 : vector<8x128xf32>
    %c0_19 = arith.constant 0 : index
    %c0_20 = arith.constant 0 : index
    %36 = vector.load %arg7[%c0_19, %c0_20] : memref<1x128xf32, #tpu.memory_space<vmem>>, vector<1x128xf32>
    %37 = vector.broadcast %36 : vector<1x128xf32> to vector<8x128xf32>
    %38 = arith.mulf %35, %37 : vector<8x128xf32>
    %c0_21 = arith.constant 0 : index
    %c0_22 = arith.constant 0 : index
    %39 = vector.load %arg8[%c0_21, %c0_22] : memref<1x128xf32, #tpu.memory_space<vmem>>, vector<1x128xf32>
    %40 = vector.broadcast %39 : vector<1x128xf32> to vector<8x128xf32>
    %41 = arith.addf %38, %40 : vector<8x128xf32>
    %c0_23 = arith.constant 0 : index
    %c0_24 = arith.constant 0 : index
    %c0_25 = arith.constant 0 : index
    %42 = vector.load %arg9[%c0_23, %c0_24, %c0_25] : memref<1x8x128xf32, #tpu.memory_space<vmem>>, vector<1x8x128xf32>
    %43 = vector.shape_cast %42 : vector<1x8x128xf32> to vector<8x128xf32>
    %44 = vector.shape_cast %41 : vector<8x128xf32> to vector<1x8x128xf32>
    tpu.vector_store %arg9[%c0_23, %c0_24, %c0_25], %44 {strides = array<i32>} : memref<1x8x128xf32, #tpu.memory_space<vmem>>, vector<1x8x128xf32>,
    return
  }
  func.func @transform_0(%arg0: i32, %arg1: i32, %arg2: memref<2x8xi32, #tpu.memory_space<smem>>) -> (i32, i32, i32) {
    %c0_i32 = arith.constant 0 : i32
    %c0_i32_0 = arith.constant 0 : i32
    return %arg0, %arg1, %c0_i32 : i32, i32, i32
  }
  func.func @transform_2(%arg0: i32, %arg1: i32, %arg2: memref<2x8xi32, #tpu.memory_space<smem>>) -> (i32, i32) {
    %c0_i32 = arith.constant 0 : i32
    %c0_i32_0 = arith.constant 0 : i32
    return %arg1, %c0_i32 : i32, i32
  }
  func.func @transform_3(%arg0: i32, %arg1: i32, %arg2: memref<2x8xi32, #tpu.memory_space<smem>>) -> (i32, i32) {
    %c0_i32 = arith.constant 0 : i32
    %c0_i32_0 = arith.constant 0 : i32
    %c0_i32_1 = arith.constant 0 : i32
    return %c0_i32, %c0_i32_0 : i32, i32
  }
  func.func @transform_4(%arg0: i32, %arg1: i32, %arg2: memref<2x8xi32, #tpu.memory_space<smem>>) -> (i32, i32) {
    %c0_i32 = arith.constant 0 : i32
    %c0_i32_0 = arith.constant 0 : i32
    %c0_i32_1 = arith.constant 0 : i32
    return %c0_i32, %c0_i32_0 : i32, i32
  }
  func.func @transform_5(%arg0: i32, %arg1: i32, %arg2: memref<2x8xi32, #tpu.memory_space<smem>>) -> (i32, i32) {
    %c0_i32 = arith.constant 0 : i32
    %c0_i32_0 = arith.constant 0 : i32
    %c0_i32_1 = arith.constant 0 : i32
    return %c0_i32, %c0_i32_0 : i32, i32
  }
  func.func @transform_6(%arg0: i32, %arg1: i32, %arg2: memref<2x8xi32, #tpu.memory_space<smem>>) -> (i32, i32, i32) {
    %c0_i32 = arith.constant 0 : i32
    %c0_i32_0 = arith.constant 0 : i32
    return %arg0, %arg1, %c0_i32 : i32, i32, i32
  }
}

</mosaic_0001>

<llo_original>
// kernel: tpu_custom_call.1
$region0: #{tpu_custom_call.1}
  #allocation0 [shape = 'u32[]', space=smem, size = 0x4, offset = 0x4, fixed_abs, tag = 'smem constant byte address 0x4 - core index']
  #allocation1 [shape = 'u32[144,128]{1,0:T(1,128)}', space=vmem, size = 0x12000, scoped, tag = 'internal scratch']
  #allocation2 [shape = 'f32[8,128]{1,0:T(8,128)}', space=vmem, size = 0x1000, scoped, tag = 'scratch operand']
  #allocation3 [shape = 's32[1]{0}', space=sflag, size = 0x4, scoped, tag = 'scratch operand']
  #allocation4 [shape = 's32[1]{0}', space=sflag, size = 0x4, scoped, tag = 'scoped memory for tpu_custom_call.1']
  #allocation5 [shape = 'u8[1024]{0}', space=smem, size = 0x400, scoped, tag = 'prefetched SMEM operand 0']
  #allocation8 [shape = 's32[]', space=sflag, size = 0x4, offset = 0, fixed_abs, tag = 'sflag constant byte address 0x0 - dummy sync flag']
  #allocation9 [shape = 's32[]', space=sflag, size = 0x4, offset = 0, fixed_abs, tag = 'sflag constant byte address 0x0 - dummy sync flag']
  #allocation10 [shape = 'u32[]', space=smem, size = 0x4, offset = 0x44, fixed_abs, tag = 'smem constant byte address 0x44 - assertion arg 0']
  #allocation11 [shape = 'u32[]', space=smem, size = 0x4, offset = 0x48, fixed_abs, tag = 'smem constant byte address 0x48 - assertion arg 1']
  %s0 = inlined_call_operand.vmem [shape: s32[2,8], index: 0, kind: input, shape index: {}]
  %s1 = inlined_call_operand.vmem [shape: s32[2,8,1], index: 1, kind: input, shape index: {}]
  %s2 = inlined_call_operand.hbm [shape: f32[64,128], index: 2, kind: input, shape index: {}]
  %s3 = inlined_call_operand.vmem [shape: f32[16,128], index: 3, kind: input, shape index: {}]
  %s4 = inlined_call_operand.vmem [shape: f32[2,128], index: 4, kind: input, shape index: {}]
  %s5 = inlined_call_operand.vmem [shape: f32[1,128], index: 5, kind: input, shape index: {}]
  %s6 = inlined_call_operand.vmem [shape: f32[1,128], index: 6, kind: input, shape index: {}]
  %s7 = inlined_call_operand.hbm [shape: f32[2,8,128], index: 7, kind: output, shape index: {}]
  %s8 = sld [smem:[#allocation0]]
  $region71: #{tpu_custom_call.1} parent=0
    _
  %s10 = ssub.s32 1, %s8
  %s11 = scalar_select 0, %s10, %s8
  %s12 = sshll.u32 %s0, 4
  %s13 = int_to_ptr.vmem [resolvable:$true] %s12
  %15 = dma.vmem_to_smem %s13, 32, [#allocation5], [#allocation4]
  %16 = dma.done [#allocation4], 32
  %17 = sfence
  $region1: #{tpu_custom_call.1} parent=0
    #allocation6 [shape = 'u8[8192]{0}', space=vmem, size = 0x2000, scoped, tag = 'output window, operand 0']
    #allocation7 [shape = 's32[2]{0}', space=sflag, size = 0x8, scoped, tag = 'scoped memory for tpu_custom_call.1']
    %18 = vsyncpa [#allocation7], 0
    %s19 = scalar_lea.sflag [#allocation7], 1
    %20 = vsyncpa %s19, 0
    loop: start=0, step=1, limit=4
    $region2: #{tpu_custom_call.1} parent=1 // loop_pre_header
      _
    $region3: #{tpu_custom_call.1} parent=1 // loop_header
      %s22 = sphi 0, %s26
      %p23 = scmp.ge.s32.totalorder %s22, 4
      %s29 = sphi 0, %s41
      %s30 = sphi 0, %s37
      %s31 = sphi 0, %s29
      %s32 = sphi 0, %s30
      %s33 = sphi 0, %s31
      %s34 = sphi 0, %s32
      %s46 = sphi 0, %s48
      %s49 = sphi 0, %s46
      %s50 = sphi 0, %s49
      %s66 = sphi 0, %s50
      %s72 = sphi 0, %s74
      %s75 = sphi 0, %s72
      %s76 = sphi 0, %s75
      %s92 = sphi 0, %s76
      %s96 = sphi 0, %s96
      %s98 = sphi 0, %s96
      %s99 = sphi 0, %s98
      %s113 = sphi 0, %s99
      %s117 = sphi 0, %s117
      %s119 = sphi 0, %s117
      %s120 = sphi 0, %s119
      %s134 = sphi 0, %s120
      %s138 = sphi 0, %s138
      %s140 = sphi 0, %s138
      %s141 = sphi 0, %s140
      %s155 = sphi 0, %s141
      %s163 = sphi 0, %s165
      %s166 = sphi 0, %s163
      %s167 = sphi 0, %s166
      %s183 = sphi 0, %s167
    $region4: #{tpu_custom_call.1} parent=1 // loop_header_branch
      %25 = sbr.rel (%p23) target = $region8
    $region5: #{tpu_custom_call.1} parent=1 // loop_body
      %s27 = ssub.s32 %s22, 1
      %s28 = ssub.s32 %s22, 2
      %s35 = sadd.s32 1, %s30
      %p36 = scmp.ge.s32.totalorder %s35, 1
      %s37 = scalar_select %p36, 0, %s35
      %s38 = sadd.s32 1, %s29
      %s39 = scalar_select %p36, %s38, %s29
      %p40 = scmp.ge.s32.totalorder %s39, 2
      %s41 = scalar_select %p40, 0, %s39
      %s42 = ssub.s32 %s29, %s41
      %s43 = ssub.s32 %s30, %s37
      %s44 = sor.u32 %s42, %s43
      %p45 = scmp.eq.s32.totalorder %s44, 0
      %s47 = sadd.s32 %s46, 1
      %s48 = scalar_select %p45, %s46, %s47
      %p51 = pneg %p45
      %p52 = scmp.eq.s32.totalorder %s22, 1
      %p53 = por %p51, %p52
      %p54 = scmp.ne.s32.totalorder %s46, %s49
      %p55 = scmp.eq.s32.totalorder %s22, 0
      %p56 = por %p54, %p55
      %p57 = scmp.ne.s32.totalorder %s46, %s49
      %p58 = scmp.eq.s32.totalorder %s27, 1
      %p59 = por %p57, %p58
      %p60 = scmp.ne.s32.totalorder %s49, %s50
      %p61 = scmp.eq.s32.totalorder %s27, 0
      %p62 = por %p60, %p61
      %p63 = scmp.ne.s32.totalorder %s49, %s50
      %p64 = scmp.eq.s32.totalorder %s28, 1
      %p65 = por %p63, %p64
      %p67 = scmp.ne.s32.totalorder %s50, %s66
      %p68 = scmp.eq.s32.totalorder %s28, 0
      %p69 = por %p67, %p68
      %s70 = ssub.s32 %s30, %s37
      %p71 = scmp.eq.s32.totalorder %s70, 0
      %s73 = sadd.s32 %s72, 1
      %s74 = scalar_select %p71, %s72, %s73
      %p77 = pneg %p71
      %p78 = scmp.eq.s32.totalorder %s22, 1
      %p79 = por %p77, %p78
      %p80 = scmp.ne.s32.totalorder %s72, %s75
      %p81 = scmp.eq.s32.totalorder %s22, 0
      %p82 = por %p80, %p81
      %p83 = scmp.ne.s32.totalorder %s72, %s75
      %p84 = scmp.eq.s32.totalorder %s27, 1
      %p85 = por %p83, %p84
      %p86 = scmp.ne.s32.totalorder %s75, %s76
      %p87 = scmp.eq.s32.totalorder %s27, 0
      %p88 = por %p86, %p87
      %p89 = scmp.ne.s32.totalorder %s75, %s76
      %p90 = scmp.eq.s32.totalorder %s28, 1
      %p91 = por %p89, %p90
      %p93 = scmp.ne.s32.totalorder %s76, %s92
      %p94 = scmp.eq.s32.totalorder %s28, 0
      %p95 = por %p93, %p94
      %s97 = sadd.s32 %s96, 1
      %p100 = scmp.eq.s32.totalorder %s22, 1
      %p101 = scmp.ne.s32.totalorder %s96, %s98
      %p102 = scmp.eq.s32.totalorder %s22, 0
      %p103 = por %p101, %p102
      %p104 = scmp.ne.s32.totalorder %s96, %s98
      %p105 = scmp.eq.s32.totalorder %s27, 1
      %p106 = por %p104, %p105
      %p107 = scmp.ne.s32.totalorder %s98, %s99
      %p108 = scmp.eq.s32.totalorder %s27, 0
      %p109 = por %p107, %p108
      %p110 = scmp.ne.s32.totalorder %s98, %s99
      %p111 = scmp.eq.s32.totalorder %s28, 1
      %p112 = por %p110, %p111
      %p114 = scmp.ne.s32.totalorder %s99, %s113
      %p115 = scmp.eq.s32.totalorder %s28, 0
      %p116 = por %p114, %p115
      %s118 = sadd.s32 %s117, 1
      %p121 = scmp.eq.s32.totalorder %s22, 1
      %p122 = scmp.ne.s32.totalorder %s117, %s119
      %p123 = scmp.eq.s32.totalorder %s22, 0
      %p124 = por %p122, %p123
      %p125 = scmp.ne.s32.totalorder %s117, %s119
      %p126 = scmp.eq.s32.totalorder %s27, 1
      %p127 = por %p125, %p126
      %p128 = scmp.ne.s32.totalorder %s119, %s120
      %p129 = scmp.eq.s32.totalorder %s27, 0
      %p130 = por %p128, %p129
      %p131 = scmp.ne.s32.totalorder %s119, %s120
      %p132 = scmp.eq.s32.totalorder %s28, 1
      %p133 = por %p131, %p132
      %p135 = scmp.ne.s32.totalorder %s120, %s134
      %p136 = scmp.eq.s32.totalorder %s28, 0
      %p137 = por %p135, %p136
      %s139 = sadd.s32 %s138, 1
      %p142 = scmp.eq.s32.totalorder %s22, 1
      %p143 = scmp.ne.s32.totalorder %s138, %s140
      %p144 = scmp.eq.s32.totalorder %s22, 0
      %p145 = por %p143, %p144
      %p146 = scmp.ne.s32.totalorder %s138, %s140
      %p147 = scmp.eq.s32.totalorder %s27, 1
      %p148 = por %p146, %p147
      %p149 = scmp.ne.s32.totalorder %s140, %s141
      %p150 = scmp.eq.s32.totalorder %s27, 0
      %p151 = por %p149, %p150
      %p152 = scmp.ne.s32.totalorder %s140, %s141
      %p153 = scmp.eq.s32.totalorder %s28, 1
      %p154 = por %p152, %p153
      %p156 = scmp.ne.s32.totalorder %s141, %s155
      %p157 = scmp.eq.s32.totalorder %s28, 0
      %p158 = por %p156, %p157
      %s159 = ssub.s32 %s29, %s41
      %s160 = ssub.s32 %s30, %s37
      %s161 = sor.u32 %s159, %s160
      %p162 = scmp.eq.s32.totalorder %s161, 0
      %s164 = sadd.s32 %s163, 1
      %s165 = scalar_select %p162, %s163, %s164
      %p168 = pneg %p162
      %p169 = scmp.eq.s32.totalorder %s22, 1
      %p170 = por %p168, %p169
      %p171 = scmp.ne.s32.totalorder %s163, %s166
      %p172 = scmp.eq.s32.totalorder %s22, 0
      %p173 = por %p171, %p172
      %p174 = scmp.ne.s32.totalorder %s163, %s166
      %p175 = scmp.eq.s32.totalorder %s27, 1
      %p176 = por %p174, %p175
      %p177 = scmp.ne.s32.totalorder %s166, %s167
      %p178 = scmp.eq.s32.totalorder %s27, 0
      %p179 = por %p177, %p178
      %p180 = scmp.ne.s32.totalorder %s166, %s167
      %p181 = scmp.eq.s32.totalorder %s28, 1
      %p182 = por %p180, %p181
      %p184 = scmp.ne.s32.totalorder %s167, %s183
      %p185 = scmp.eq.s32.totalorder %s28, 0
      %p186 = por %p184, %p185
      %p187 = scmp.le.s32.totalorder 1, %s22
      %p188 = scmp.lt.s32.totalorder %s22, 3
      %p189 = pnand %p187, %p188
      %p190 = pneg %p189
      // Predicated region
      $region9: #{tpu_custom_call.1} parent=5 // pred_check
        _
      $region10: #{tpu_custom_call.1} parent=5 // pred_check_branch
        %192 = sbr.rel (%p189) target = $region12
      $region11: #{tpu_custom_call.1} parent=5 // pred_region
        %s193 = ssub.s32 %s22, 1
        // Predicated region
        $region13: #{tpu_custom_call.1} parent=11 // pred_check
          %p194 = pneg %p88
        $region14: #{tpu_custom_call.1} parent=11 // pred_check_branch
          %196 = sbr.rel (%p194) target = $region16
        $region15: #{tpu_custom_call.1} parent=11 // pred_region
          %p197 = scmp.lt.s32.totalorder %s32, 1
          %s198 = scalar_select %p197, %s32, 1
          %s199 = smul.addr %s198, 8
          %s200 = scalar_lea.vmem %s3, %s199
        $region16: #{tpu_custom_call.1} parent=11 // pred_fallthru
          _
        // Predicated region
        $region17: #{tpu_custom_call.1} parent=11 // pred_check
          %p201 = pneg %p109
        $region18: #{tpu_custom_call.1} parent=11 // pred_check_branch
          %203 = sbr.rel (%p201) target = $region20
        $region19: #{tpu_custom_call.1} parent=11 // pred_region
          _
        $region20: #{tpu_custom_call.1} parent=11 // pred_fallthru
          _
        // Predicated region
        $region21: #{tpu_custom_call.1} parent=11 // pred_check
          %p204 = pneg %p130
        $region22: #{tpu_custom_call.1} parent=11 // pred_check_branch
          %206 = sbr.rel (%p204) target = $region24
        $region23: #{tpu_custom_call.1} parent=11 // pred_region
          _
        $region24: #{tpu_custom_call.1} parent=11 // pred_fallthru
          _
        // Predicated region
        $region25: #{tpu_custom_call.1} parent=11 // pred_check
          %p207 = pneg %p151
        $region26: #{tpu_custom_call.1} parent=11 // pred_check_branch
          %209 = sbr.rel (%p207) target = $region28
        $region27: #{tpu_custom_call.1} parent=11 // pred_region
          _
        $region28: #{tpu_custom_call.1} parent=11 // pred_fallthru
          _
      $region12: #{tpu_custom_call.1} parent=5 // pred_fallthru
        _
      %p210 = scmp.lt.s32.totalorder %s22, 2
      // Predicated region
      $region29: #{tpu_custom_call.1} parent=5 // pred_check
        %p211 = pneg %p210
      $region30: #{tpu_custom_call.1} parent=5 // pred_check_branch
        %213 = sbr.rel (%p211) target = $region32
      $region31: #{tpu_custom_call.1} parent=5 // pred_region
        // Predicated region
        $region33: #{tpu_custom_call.1} parent=31 // pred_check
          %p214 = pneg %p56
        $region34: #{tpu_custom_call.1} parent=31 // pred_check_branch
          %216 = sbr.rel (%p214) target = $region36
        $region35: #{tpu_custom_call.1} parent=31 // pred_region
          %p217 = scmp.lt.s32.totalorder %s29, 1
          %s218 = scalar_select %p217, %s29, 1
          %p219 = scmp.lt.s32.totalorder %s30, 0
          %s220 = scalar_select %p219, %s30, 0
          %s221 = sadd.s32 %s220, %s218
          %s222 = smul.addr %s221, 8
          %s223 = scalar_lea.vmem %s1, %s222
        $region36: #{tpu_custom_call.1} parent=31 // pred_fallthru
          _
      $region32: #{tpu_custom_call.1} parent=5 // pred_fallthru
        _
      %p224 = scmp.le.s32.totalorder 1, %s22
      %p225 = scmp.lt.s32.totalorder %s22, 3
      %p226 = pnand %p224, %p225
      %p227 = pneg %p226
      // Predicated region
      $region37: #{tpu_custom_call.1} parent=5 // pred_check
        _
      $region38: #{tpu_custom_call.1} parent=5 // pred_check_branch
        %229 = sbr.rel (%p226) target = $region40
      $region39: #{tpu_custom_call.1} parent=5 // pred_region
        %s230 = ssub.s32 %s22, 1
        %p231 = scmp.lt.s32.totalorder %s31, 1
        %s232 = scalar_select %p231, %s31, 1
        %p233 = scmp.lt.s32.totalorder %s32, 0
        %s234 = scalar_select %p233, %s32, 0
        %s235 = sadd.s32 %s234, %s232
        %s236 = smul.addr %s235, 8
        %s237 = scalar_lea.vmem %s1, %s236
        %p238 = pneg %p62
        %p239 = pneg %p59
        %p240 = scmp.lt.s32.totalorder %s32, 1
        %s241 = scalar_select %p240, %s32, 1
        %s242 = smul.addr %s241, 8
        %s243 = scalar_lea.vmem %s3, %s242
        %p244 = pneg %p88
        %p245 = pneg %p85
        %p246 = pneg %p109
        %p247 = pneg %p106
        %p248 = pneg %p130
        %p249 = pneg %p127
        %p250 = pneg %p151
        %p251 = pneg %p148
        %p252 = pneg %p179
        %p253 = pneg %p176
        %s254 = sand.u32 %s166, 1
        %s255 = scalar_lea.sflag [#allocation7], %s254
        %s256 = sand.u32 %s166, 1
        %s257 = smul.addr %s256, 8
        %s258 = scalar_lea.vmem [#allocation6], %s257
        %p259 = scmp.lt.s32.totalorder %s31, 1
        %s260 = scalar_select %p259, %s31, 1
        %p261 = scmp.lt.s32.totalorder %s32, 0
        %s262 = scalar_select %p261, %s32, 0
        %s263 = sadd.s32 %s262, %s260
        %s264 = smul.addr %s263, 8
        %s265 = scalar_lea.vmem %s1, %s264
        %p266 = scmp.lt.s32.totalorder %s32, 1
        %s267 = scalar_select %p266, %s32, 1
        %s268 = smul.addr %s267, 8
        %s269 = scalar_lea.vmem %s3, %s268
        %s270 = smul.u32 %s32, 8
        loop: start=0, step=1, limit=8
        $region41: #{tpu_custom_call.1} parent=39 // loop_pre_header
          _
        $region42: #{tpu_custom_call.1} parent=39 // loop_header
          %s272 = sphi 0, %s276
          %p273 = scmp.ge.s32.totalorder %s272, 8
        $region43: #{tpu_custom_call.1} parent=39 // loop_header_branch
          %275 = sbr.rel (%p273) target = $region47
        $region44: #{tpu_custom_call.1} parent=39 // loop_body
          %s277 = sadd.s32 %s270, %s272
          %s278 = sshra.s32 %s277, 7
          %s279 = sand.u32 %s277, 127
          %s280 = sadd.s32 %s278, %s31
          %s281 = smul.u32 %s280, 128
          %s282 = sshra.s32 %s277, 7
          %s283 = sand.u32 %s277, 127
          %s284 = sadd.s32 %s281, %s283
          %s285 = sld [smem:[#allocation5 + %s284]]
          %p286 = scmp.gt.s32.totalorder %s285, 0
          %s287 = scalar_select %p286, %s285, 0
          %p288 = scmp.lt.s32.totalorder %s287, 63
          %s289 = scalar_select %p288, %s287, 63
          %s290 = smul.addr %s289, 16
          %s291 = scalar_lea.hbm %s2, %s290
          %s292 = scalar_lea.vmem [#allocation2], %s272
          // Predicated region
          $region48: #{tpu_custom_call.1} parent=44 // pred_check
            _
          $region49: #{tpu_custom_call.1} parent=44 // pred_check_branch
            %294 = sbr.rel target = $region51
          $region50: #{tpu_custom_call.1} parent=44 // pred_region
            %295 = sst [smem:[#allocation10]] [#allocation9]
            %296 = sst [smem:[#allocation11]] [#allocation8]
          $region51: #{tpu_custom_call.1} parent=44 // pred_fallthru
            _
          %298 = shalt.err (0)
          %s300 = sshll.u32 %s292, 4
          %s301 = int_to_ptr.vmem [resolvable:$true] %s300
          %303 = dma.hbm_to_vmem [thread:$0]  %s291, 16, %s301, [#allocation3]
        $region45: #{tpu_custom_call.1} parent=39 // loop_footer
          %s276 = sadd.s32 1, %s272
        $region46: #{tpu_custom_call.1} parent=39 // loop_footer_branch
          %271 = sbr.rel target = $region42
        $region47: #{tpu_custom_call.1} parent=39 // loop_exit
          _
        %v304 = vld [vmem:[%s269] sm:$0xff]
        %v305 = vld [vmem:[%s265] sm:$0xff]
        %v306 = vld [vmem:[%s4] sm:$0x1]
        %v307 = vld [vmem:[%s4 + $0x1] sm:$0x1]
        %vm308 = vcmp.eq.s32.totalorder %v305, 0
        %v309 = vsel %vm308, 1, 0
        %310 = vset.pattern.permute.xlu0 0
        %311 = vperm.xlu0 %310, %v309
        %v312 = vpop.permute.xlu0 %311
        %vm313 = vcmp.eq.s32.totalorder %v312, 1
        %v314 = vlaneseq
        %v315 = vshrl.u32 %v314, 7
        %v316 = vsub.s32 0, %v315
        %v317 = vrot.slane %v306, %v316
        %v318 = vlaneseq
        %v319 = vshrl.u32 %v318, 7
        %v320 = vsub.s32 0, %v319
        %v321 = vrot.slane %v307, %v320
        %v322 = vsel %vm313, %v317, %v321
        %v323 = vadd.f32 %v304, %v322
        loop: start=0, step=1, limit=8
        $region52: #{tpu_custom_call.1} parent=39 // loop_pre_header
          _
        $region53: #{tpu_custom_call.1} parent=39 // loop_header
          %s325 = sphi 0, %s329
          %p326 = scmp.ge.s32.totalorder %s325, 8
        $region54: #{tpu_custom_call.1} parent=39 // loop_header_branch
          %328 = sbr.rel (%p326) target = $region58
        $region55: #{tpu_custom_call.1} parent=39 // loop_body
          %s330 = smul.u32 1, 1
          %s331 = sshll.u32 %s330, 4
          %332 = dma.done [#allocation3], %s331
        $region56: #{tpu_custom_call.1} parent=39 // loop_footer
          %s329 = sadd.s32 1, %s325
        $region57: #{tpu_custom_call.1} parent=39 // loop_footer_branch
          %324 = sbr.rel target = $region53
        $region58: #{tpu_custom_call.1} parent=39 // loop_exit
          _
        %v333 = vld [vmem:[#allocation2] sm:$0xff]
        %v334 = vadd.f32 %v333, %v323
        %335 = vadd.xlane.f32.xlu0 %v334
        %v336 = vpop.xlane.xlu0 %335
        %v337 = vrcp.pop 128.0
        %v338 = vmul.f32 %v336, %v337
        %v339 = vsub.f32 %v334, %v338
        %v340 = vmul.f32 %v339, %v339
        %341 = vadd.xlane.f32.xlu0 %v340
        %v342 = vpop.xlane.xlu0 %341
        %v343 = vmul.f32 %v342, %v337
        %v344 = vadd.f32 %v343, 1e-05
        %v345 = vrsqrt.pop %v344
        %v346 = vmul.f32 %v339, %v345
        %v347 = vld [vmem:[%s5] sm:$0x1]
        %v349 = vlaneseq
        %v350 = vshrl.u32 %v349, 7
        %v351 = vsub.s32 0, %v350
        %v352 = vrot.slane %v347, %v351
        %v354 = vmul.f32 %v346, %v352
        %v355 = vld [vmem:[%s6] sm:$0x1]
        %v357 = vlaneseq
        %v358 = vshrl.u32 %v357, 7
        %v359 = vsub.s32 0, %v358
        %v360 = vrot.slane %v355, %v359
        %v362 = vadd.f32 %v354, %v360
        %363 = vst [vmem:[%s258] sm:$0xff] %v362
        %s364 = sand.u32 %s166, 1
        %s365 = scalar_lea.sflag [#allocation7], %s364
        %s366 = sand.u32 %s166, 1
        %s367 = smul.addr %s366, 8
        %s368 = scalar_lea.vmem [#allocation6], %s367
        // Predicated region
        $region59: #{tpu_custom_call.1} parent=39 // pred_check
          %p369 = pneg %p176
        $region60: #{tpu_custom_call.1} parent=39 // pred_check_branch
          %371 = sbr.rel (%p369) target = $region62
        $region61: #{tpu_custom_call.1} parent=39 // pred_region
          %s373 = ssub.s32 128, 128
          %374 = vsyncadd %s365, %s373
          %s375 = sadd.s32 %s32, %s31
          %s376 = smul.addr %s375, 128
          %s377 = scalar_lea.hbm %s7, %s376
          %s379 = sshll.u32 %s368, 4
          %s380 = int_to_ptr.vmem [resolvable:$true] %s379
          %382 = dma.vmem_to_hbm [thread:$0]  %s380, 128, %s377, %s365
        $region62: #{tpu_custom_call.1} parent=39 // pred_fallthru
          _
      $region40: #{tpu_custom_call.1} parent=5 // pred_fallthru
        _
      %p383 = scmp.le.s32.totalorder 2, %s22
      // Predicated region
      $region63: #{tpu_custom_call.1} parent=5 // pred_check
        %p384 = pneg %p383
      $region64: #{tpu_custom_call.1} parent=5 // pred_check_branch
        %386 = sbr.rel (%p384) target = $region66
      $region65: #{tpu_custom_call.1} parent=5 // pred_region
        %s387 = ssub.s32 %s22, 2
        // Predicated region
        $region67: #{tpu_custom_call.1} parent=65 // pred_check
          %p388 = pneg %p182
        $region68: #{tpu_custom_call.1} parent=65 // pred_check_branch
          %390 = sbr.rel (%p388) target = $region70
        $region69: #{tpu_custom_call.1} parent=65 // pred_region
          %s391 = sand.u32 %s167, 1
          %s392 = scalar_lea.sflag [#allocation7], %s391
          %s393 = sand.u32 %s167, 1
          %s394 = smul.addr %s393, 8
          %s395 = scalar_lea.vmem [#allocation6], %s394
          %396 = dma.done %s392, 128
        $region70: #{tpu_custom_call.1} parent=65 // pred_fallthru
          _
      $region66: #{tpu_custom_call.1} parent=5 // pred_fallthru
        _
    $region6: #{tpu_custom_call.1} parent=1 // loop_footer
      %s26 = sadd.s32 1, %s22
    $region7: #{tpu_custom_call.1} parent=1 // loop_footer_branch
      %21 = sbr.rel target = $region3
    $region8: #{tpu_custom_call.1} parent=1 // loop_exit
      _
    %397 = vsyncpa [#allocation7], 1
    %s398 = scalar_lea.sflag [#allocation7], 1
    %399 = vsyncpa %s398, 1
  %400 = vsyncmov [#allocation3]
  %s401 = vpop.sfrf %400
  %p402 = scmp.eq.s32.totalorder %s401, 0
  %p403 = pneg %p402
  %405 = shalt.err (%p403)

</llo_original>
